<compile_context>
chip_gen: v5e
topology: v5e:2x2
jax: 0.10.0
libtpu: 0.0.40
codegen_flags: <defaults>
</compile_context>

<pallas_src>
import functools

import jax
import jax.numpy as jnp
from jax import lax
from jax.experimental import pallas as pl
from jax.experimental.pallas import tpu as pltpu


def _round_up(x, m):
    return ((x + m - 1) // m) * m


def _fused_path_mlp_kernel(idx_ref, f_ref, b1_ref, w2_ref, b2_ref, o_ref, *,
                           n_chunks, rb, n_gather, c_pad):
    """One token tile: gather(folded tables) -> +b1 -> ReLU -> @W2^T -> +b2.

    idx_ref : (TM, n_gather) int32  global row ids into the stacked folded table
    f_ref   : (c_pad, 4H)           folded (tag|sub) @ W1^T tables (VMEM resident)
    b1_ref  : (1, 4H) f32           w2_ref : (4H, H)       b2_ref : (1, H) f32
    o_ref   : (TM, H)
    """
    cdt = f_ref.dtype

    def chunk(j, carry):
        r = pl.multiple_of(j * rb, rb)
        idx = idx_ref[pl.ds(r, rb), :]                                  # (rb, 2D) int32
        lane = lax.broadcasted_iota(jnp.int32, (rb, c_pad), 1)
        # One-hot over the stacked table rows. The 2D per-token indices live in
        # disjoint row ranges (per-depth / tag-vs-sub offsets), so summing the
        # equality masks is an exact multi-hot.
        onehot = jnp.zeros((rb, c_pad), dtype=jnp.float32)
        for d in range(n_gather):
            onehot += (idx[:, d:d + 1] == lane).astype(jnp.float32)
        # Gather + depth-sum + first linear == one MXU matmul (contraction c_pad).
        pre = jnp.dot(onehot.astype(cdt), f_ref[...],
                      preferred_element_type=jnp.float32)               # (rb, 4H)
        h = jnp.maximum(pre + b1_ref[...], 0.0)                         # bias+ReLU, f32 VPU
        # TODO(synk): training-mode dropout (pltpu.prng_*) not implemented; eval dropout == identity.
        y = jnp.dot(h.astype(w2_ref.dtype), w2_ref[...],
                    preferred_element_type=jnp.float32)                 # (rb, H)
        o_ref[pl.ds(r, rb), :] = (y + b2_ref[...]).astype(o_ref.dtype)
        return carry

    lax.fori_loop(0, n_chunks, chunk, 0, unroll=True)


def _xla_forward(path_tags_seq, path_subs_seq, params):
    """Plain-XLA path for tiny token counts (module semantics, eval mode)."""
    D = path_tags_seq.shape[-1]
    tags = jnp.concatenate(
        [params["tag_tables"][i][path_tags_seq[..., i]] for i in range(D)], axis=-1)
    subs = jnp.concatenate(
        [params["sub_tables"][i][path_subs_seq[..., i]] for i in range(D)], axis=-1)
    x = tags + subs
    h = jnp.maximum(jnp.dot(x, params["w_inner"].T) + params["b_inner"], 0.0)
    return jnp.dot(h, params["w_out"].T) + params["b_out"]


def path_embeddings_forward(path_tags_seq, path_subs_seq, params, *,
                            tile_m=512, compute_dtype=None,
                            min_pallas_tokens=1024):
    """Forward pass of PathEmbeddings.

    params:
      tag_tables: (D, V_tag, P)   sub_tables: (D, V_sub, P)
      w_inner: (4H, D*P)  b_inner: (4H,)     # path_unitseq2_inner (torch layout)
      w_out:   (H, 4H)    b_out:   (H,)      # inner2emb           (torch layout)
    """
    tag_tables = params["tag_tables"]
    sub_tables = params["sub_tables"]
    w_inner, b_inner = params["w_inner"], params["b_inner"]
    w_out, b_out = params["w_out"], params["b_out"]

    B, S, D = path_tags_seq.shape
    V_tag, P = tag_tables.shape[1], tag_tables.shape[2]
    V_sub = sub_tables.shape[1]
    H4 = w_inner.shape[0]
    H = w_out.shape[0]
    M = B * S

    if M < min_pallas_tokens:
        # Launch + single-grid-step overhead dominates at tiny M; XLA fuses
        # gather + MLP into one kernel and wins outright.
        return _xla_forward(path_tags_seq, path_subs_seq, params)

    cdt = jnp.dtype(compute_dtype) if compute_dtype is not None else jnp.dtype(w_inner.dtype)
    out_dtype = w_inner.dtype

    # ---- fold W1 into the per-depth embedding tables (wrapper-side, once) ----
    hi = lax.Precision.HIGHEST
    folded = []
    for i in range(D):
        w1_i = w_inner[:, i * P:(i + 1) * P]                            # (4H, P)
        folded.append(jnp.dot(tag_tables[i], w1_i.T, precision=hi))     # (V_tag, 4H)
    for i in range(D):
        w1_i = w_inner[:, i * P:(i + 1) * P]
        folded.append(jnp.dot(sub_tables[i], w1_i.T, precision=hi))     # (V_sub, 4H)
    f_stacked = jnp.concatenate(folded, axis=0)                          # (C, 4H)
    C = D * V_tag + D * V_sub
    C_pad = _round_up(C, 128)                                            # MXU-friendly contraction
    if C_pad != C:
        f_stacked = jnp.pad(f_stacked, ((0, C_pad - C), (0, 0)))
    f_stacked = f_stacked.astype(cdt)
    w2_t = w_out.T.astype(cdt)                                           # (4H, H)
    b1_2d = b_inner.reshape(1, H4).astype(jnp.float32)
    b2_2d = b_out.reshape(1, H).astype(jnp.float32)

    # ---- global gather indices (tags then subs -> disjoint row ranges of F) --
    tag_off = (jnp.arange(D, dtype=jnp.int32) * V_tag)[None, :]
    sub_off = (D * V_tag + jnp.arange(D, dtype=jnp.int32) * V_sub)[None, :]
    col_idx = jnp.concatenate(
        [path_tags_seq.reshape(M, D).astype(jnp.int32) + tag_off,
         path_subs_seq.reshape(M, D).astype(jnp.int32) + sub_off], axis=-1)   # (M, 2D)

    # ---- token tiling: big tiles, 128-row in-kernel sub-chunks ---------------
    TM = _round_up(min(tile_m, M), 8)
    if TM > 128:
        TM = _round_up(TM, 128)
    M_pad = _round_up(M, TM)
    if M_pad != M:
        col_idx = jnp.pad(col_idx, ((0, M_pad - M), (0, 0)))
    rb = min(TM, 128)
    n_chunks = TM // rb
    n_gather = 2 * D

    kernel = functools.partial(_fused_path_mlp_kernel, n_chunks=n_chunks,
                               rb=rb, n_gather=n_gather, c_pad=C_pad)

    bytes_accessed = (col_idx.size * 4
                      + f_stacked.size * f_stacked.dtype.itemsize
                      + b1_2d.size * 4
                      + w2_t.size * w2_t.dtype.itemsize
                      + b2_2d.size * 4
                      + M_pad * H * jnp.dtype(out_dtype).itemsize)
    cost = pl.CostEstimate(
        flops=2 * M_pad * C_pad * H4 + 2 * M_pad * H4 * H,
        transcendentals=0,
        bytes_accessed=int(bytes_accessed))

    out = pl.pallas_call(
        kernel,
        out_shape=jax.ShapeDtypeStruct((M_pad, H), out_dtype),
        grid=(M_pad // TM,),
        in_specs=[
            pl.BlockSpec((TM, n_gather), lambda i: (i, 0)),   # streamed index tile
            pl.BlockSpec((C_pad, H4), lambda i: (0, 0)),      # folded tables, VMEM resident
            pl.BlockSpec((1, H4), lambda i: (0, 0)),          # b1 resident
            pl.BlockSpec((H4, H), lambda i: (0, 0)),          # W2^T resident
            pl.BlockSpec((1, H), lambda i: (0, 0)),           # b2 resident
        ],
        out_specs=pl.BlockSpec((TM, H), lambda i: (i, 0)),
        compiler_params=pltpu.CompilerParams(
            # TODO(synk): on v7x, switch to pltpu.CORE_PARALLEL to make the
            # 2-TensorCore split of the token grid explicit.
            dimension_semantics=("parallel",),
            vmem_limit_bytes=32 * 1024 * 1024,
        ),
        cost_estimate=cost,
    )(col_idx, f_stacked, b1_2d, w2_t, b2_2d)

    # TODO(synk): on v5e, emitting the output lane-dense as (H, M_pad) (and
    # un-transposing in XLA) would avoid masked vst when H < 128.
    return out[:M].reshape(B, S, H)


# ----------------------------------------------------------------------------
# Reference + demo
# ----------------------------------------------------------------------------
def _reference(path_tags_seq, path_subs_seq, params):
    D = path_tags_seq.shape[-1]
    hi = lax.Precision.HIGHEST
    tags = jnp.concatenate(
        [params["tag_tables"][i][path_tags_seq[..., i]] for i in range(D)], axis=-1)
    subs = jnp.concatenate(
        [params["sub_tables"][i][path_subs_seq[..., i]] for i in range(D)], axis=-1)
    x = tags + subs
    h = jnp.maximum(jnp.dot(x, params["w_inner"].T, precision=hi) + params["b_inner"], 0.0)
    return jnp.dot(h, params["w_out"].T, precision=hi) + params["b_out"]


def _make_inputs(key, B, S, D, P, H, V_tag, V_sub):
    k_ti, k_si, k_tt, k_st, k_w1, k_b1, k_w2, k_b2 = jax.random.split(key, 8)
    K, H4 = D * P, 4 * H
    b1_bound = 1.0 / (K ** 0.5)
    b2_bound = 1.0 / (H4 ** 0.5)
    path_tags_seq = jax.random.randint(k_ti, (B, S, D), 0, V_tag, dtype=jnp.int32)
    path_subs_seq = jax.random.randint(k_si, (B, S, D), 0, V_sub, dtype=jnp.int32)
    params = {
        # nn.Embedding-style N(0,1) tables, stacked over depth.
        "tag_tables": jax.random.normal(k_tt, (D, V_tag, P), dtype=jnp.float32),
        "sub_tables": jax.random.normal(k_st, (D, V_sub, P), dtype=jnp.float32),
        # nn.Linear-style uniform fan-in init (torch (out, in) layout).
        "w_inner": jax.random.uniform(k_w1, (H4, K), minval=-b1_bound,
                                      maxval=b1_bound, dtype=jnp.float32),
        "b_inner": jax.random.uniform(k_b1, (H4,), minval=-b1_bound,
                                      maxval=b1_bound, dtype=jnp.float32),
        "w_out": jax.random.uniform(k_w2, (H, H4), minval=-b2_bound,
                                    maxval=b2_bound, dtype=jnp.float32),
        "b_out": jax.random.uniform(k_b2, (H,), minval=-b2_bound,
                                    maxval=b2_bound, dtype=jnp.float32),
    }
    return path_tags_seq, path_subs_seq, params


if __name__ == "__main__":
    # Config consistent with the module: max_depth=4, path_unit_hidden_size=8,
    # hidden_size=32, 16-entry tag/sub vocabularies.
    D, P, H = 4, 8, 32
    V_TAG, V_SUB = 16, 16
    key = jax.random.PRNGKey(0)
    k_small, k_large = jax.random.split(key, 2)

    # 1) Small shapes (batch=2, seq=8): force the Pallas path to validate the
    #    kernel at tiny M (the default wrapper routes tiny M to the XLA fallback).
    tags_s, subs_s, params_s = _make_inputs(k_small, 2, 8, D, P, H, V_TAG, V_SUB)
    out_s = path_embeddings_forward(tags_s, subs_s, params_s, min_pallas_tokens=0)
    jax.block_until_ready(out_s)
    ref_s = _reference(tags_s, subs_s, params_s)
    assert out_s.shape == (2, 8, H)
    assert jnp.allclose(out_s, ref_s, atol=1e-3, rtol=1e-3), \
        float(jnp.max(jnp.abs(out_s - ref_s)))

    # 1b) Default routing at tiny M uses the XLA fallback; must also match.
    out_fb = path_embeddings_forward(tags_s, subs_s, params_s)
    jax.block_until_ready(out_fb)
    assert jnp.allclose(out_fb, ref_s, atol=1e-3, rtol=1e-3)

    # 2) Larger token count (batch=4, seq=512 -> M=2048): Pallas path, TM=512.
    tags_l, subs_l, params_l = _make_inputs(k_large, 4, 512, D, P, H, V_TAG, V_SUB)
    out_l = path_embeddings_forward(tags_l, subs_l, params_l, tile_m=512)
    jax.block_until_ready(out_l)
    ref_l = _reference(tags_l, subs_l, params_l)
    assert out_l.shape == (4, 512, H)
    assert jnp.allclose(out_l, ref_l, atol=1e-3, rtol=1e-3), \
        float(jnp.max(jnp.abs(out_l - ref_l)))

    # 3) bf16 compute path (v6e/v7x): folded tables / W2 / one-hot in bf16,
    #    f32 MXU accumulation and f32 bias adds.
    out_bf = path_embeddings_forward(tags_l, subs_l, params_l, tile_m=512,
                                     compute_dtype=jnp.bfloat16)
    jax.block_until_ready(out_bf)
    assert jnp.allclose(out_bf, ref_l, atol=5e-2, rtol=5e-2), \
        float(jnp.max(jnp.abs(out_bf - ref_l)))

    print("KERNEL_OK")
</pallas_src>

<mosaic_0001>
module attributes {stable_mosaic.version = 11 : i64} {
  func.func @_fused_path_mlp_kernel(%arg0: i32, %arg1: memref<16x8xi32, #tpu.memory_space<vmem>>, %arg2: memref<128x128xf32, #tpu.memory_space<vmem>>, %arg3: memref<1x128xf32, #tpu.memory_space<vmem>>, %arg4: memref<128x32xf32, #tpu.memory_space<vmem>>, %arg5: memref<1x32xf32, #tpu.memory_space<vmem>>, %arg6: memref<16x32xf32, #tpu.memory_space<vmem>>) attributes {dimension_semantics = [#tpu.dimension_semantics<parallel>], iteration_bounds = array<i64: 1>, scalar_prefetch = 0 : i64, scratch_operands = 0 : i64, tpu.core_type = #tpu.core_type<tc>, window_params = [{transform_indices = @transform_0, window_bounds = array<i64: 16, 8>}, {pipeline_mode = #tpu.pipeline_mode<synchronous>, transform_indices = @transform_1, window_bounds = array<i64: 128, 128>}, {pipeline_mode = #tpu.pipeline_mode<synchronous>, transform_indices = @transform_2, window_bounds = array<i64: 1, 128>}, {pipeline_mode = #tpu.pipeline_mode<synchronous>, transform_indices = @transform_3, window_bounds = array<i64: 128, 32>}, {pipeline_mode = #tpu.pipeline_mode<synchronous>, transform_indices = @transform_4, window_bounds = array<i64: 1, 32>}, {transform_indices = @transform_5, window_bounds = array<i64: 16, 32>}]} {
    %c0_i32 = arith.constant 0 : i32
    %c16_i32 = arith.constant 16 : i32
    %0 = arith.muli %c0_i32, %c16_i32 : i32
    %1 = tpu.assume_multiple %0, 16 : i32
    %2 = arith.index_cast %1 : i32 to index
    %c0 = arith.constant 0 : index
    %3 = vector.load %arg1[%2, %c0] : memref<16x8xi32, #tpu.memory_space<vmem>>, vector<16x8xi32>
    %4 = tpu.iota {dimensions = array<i32: 1>} : vector<16x128xi32>
    %cst = arith.constant 0.000000e+00 : f32
    %5 = vector.broadcast %cst : f32 to vector<16x128xf32>
    %6 = vector.extract_strided_slice %3 {offsets = [0, 0], sizes = [16, 1], strides = [1, 1]} : vector<16x8xi32> to vector<16x1xi32>
    %7 = vector.broadcast %6 : vector<16x1xi32> to vector<16x128xi32>
    %8 = arith.cmpi eq, %7, %4 : vector<16x128xi32>
    %9 = arith.extui %8 : vector<16x128xi1> to vector<16x128xi32>
    %10 = arith.sitofp %9 : vector<16x128xi32> to vector<16x128xf32>
    %11 = arith.addf %5, %10 : vector<16x128xf32>
    %12 = vector.extract_strided_slice %3 {offsets = [0, 1], sizes = [16, 1], strides = [1, 1]} : vector<16x8xi32> to vector<16x1xi32>
    %13 = vector.broadcast %12 : vector<16x1xi32> to vector<16x128xi32>
    %14 = arith.cmpi eq, %13, %4 : vector<16x128xi32>
    %15 = arith.extui %14 : vector<16x128xi1> to vector<16x128xi32>
    %16 = arith.sitofp %15 : vector<16x128xi32> to vector<16x128xf32>
    %17 = arith.addf %11, %16 : vector<16x128xf32>
    %18 = vector.extract_strided_slice %3 {offsets = [0, 2], sizes = [16, 1], strides = [1, 1]} : vector<16x8xi32> to vector<16x1xi32>
    %19 = vector.broadcast %18 : vector<16x1xi32> to vector<16x128xi32>
    %20 = arith.cmpi eq, %19, %4 : vector<16x128xi32>
    %21 = arith.extui %20 : vector<16x128xi1> to vector<16x128xi32>
    %22 = arith.sitofp %21 : vector<16x128xi32> to vector<16x128xf32>
    %23 = arith.addf %17, %22 : vector<16x128xf32>
    %24 = vector.extract_strided_slice %3 {offsets = [0, 3], sizes = [16, 1], strides = [1, 1]} : vector<16x8xi32> to vector<16x1xi32>
    %25 = vector.broadcast %24 : vector<16x1xi32> to vector<16x128xi32>
    %26 = arith.cmpi eq, %25, %4 : vector<16x128xi32>
    %27 = arith.extui %26 : vector<16x128xi1> to vector<16x128xi32>
    %28 = arith.sitofp %27 : vector<16x128xi32> to vector<16x128xf32>
    %29 = arith.addf %23, %28 : vector<16x128xf32>
    %30 = vector.extract_strided_slice %3 {offsets = [0, 4], sizes = [16, 1], strides = [1, 1]} : vector<16x8xi32> to vector<16x1xi32>
    %31 = vector.broadcast %30 : vector<16x1xi32> to vector<16x128xi32>
    %32 = arith.cmpi eq, %31, %4 : vector<16x128xi32>
    %33 = arith.extui %32 : vector<16x128xi1> to vector<16x128xi32>
    %34 = arith.sitofp %33 : vector<16x128xi32> to vector<16x128xf32>
    %35 = arith.addf %29, %34 : vector<16x128xf32>
    %36 = vector.extract_strided_slice %3 {offsets = [0, 5], sizes = [16, 1], strides = [1, 1]} : vector<16x8xi32> to vector<16x1xi32>
    %37 = vector.broadcast %36 : vector<16x1xi32> to vector<16x128xi32>
    %38 = arith.cmpi eq, %37, %4 : vector<16x128xi32>
    %39 = arith.extui %38 : vector<16x128xi1> to vector<16x128xi32>
    %40 = arith.sitofp %39 : vector<16x128xi32> to vector<16x128xf32>
    %41 = arith.addf %35, %40 : vector<16x128xf32>
    %42 = vector.extract_strided_slice %3 {offsets = [0, 6], sizes = [16, 1], strides = [1, 1]} : vector<16x8xi32> to vector<16x1xi32>
    %43 = vector.broadcast %42 : vector<16x1xi32> to vector<16x128xi32>
    %44 = arith.cmpi eq, %43, %4 : vector<16x128xi32>
    %45 = arith.extui %44 : vector<16x128xi1> to vector<16x128xi32>
    %46 = arith.sitofp %45 : vector<16x128xi32> to vector<16x128xf32>
    %47 = arith.addf %41, %46 : vector<16x128xf32>
    %48 = vector.extract_strided_slice %3 {offsets = [0, 7], sizes = [16, 1], strides = [1, 1]} : vector<16x8xi32> to vector<16x1xi32>
    %49 = vector.broadcast %48 : vector<16x1xi32> to vector<16x128xi32>
    %50 = arith.cmpi eq, %49, %4 : vector<16x128xi32>
    %51 = arith.extui %50 : vector<16x128xi1> to vector<16x128xi32>
    %52 = arith.sitofp %51 : vector<16x128xi32> to vector<16x128xf32>
    %53 = arith.addf %47, %52 : vector<16x128xf32>
    %c0_0 = arith.constant 0 : index
    %c0_1 = arith.constant 0 : index
    %54 = vector.load %arg2[%c0_0, %c0_1] : memref<128x128xf32, #tpu.memory_space<vmem>>, vector<128x128xf32>
    %cst_2 = arith.constant dense<0.000000e+00> : vector<16x128xf32>
    %55 = tpu.matmul %53, %54, %cst_2 {dimension_numbers = #tpu.dot_dimension_numbers<[1], [0], [0], [1], [0, 0, 1, 1], [], []>} : vector<16x128xf32>, vector<128x128xf32>, vector<16x128xf32> -> vector<16x128xf32>
    %c0_3 = arith.constant 0 : index
    %c0_4 = arith.constant 0 : index
    %56 = vector.load %arg3[%c0_3, %c0_4] : memref<1x128xf32, #tpu.memory_space<vmem>>, vector<1x128xf32>
    %57 = vector.broadcast %56 : vector<1x128xf32> to vector<16x128xf32>
    %58 = arith.addf %55, %57 : vector<16x128xf32>
    %cst_5 = arith.constant 0.000000e+00 : f32
    %59 = vector.broadcast %cst_5 : f32 to vector<16x128xf32>
    %60 = arith.maximumf %58, %59 : vector<16x128xf32>
    %c0_6 = arith.constant 0 : index
    %c0_7 = arith.constant 0 : index
    %61 = vector.load %arg4[%c0_6, %c0_7] : memref<128x32xf32, #tpu.memory_space<vmem>>, vector<128x32xf32>
    %cst_8 = arith.constant dense<0.000000e+00> : vector<16x32xf32>
    %62 = tpu.matmul %60, %61, %cst_8 {dimension_numbers = #tpu.dot_dimension_numbers<[1], [0], [0], [1], [0, 0, 1, 1], [], []>} : vector<16x128xf32>, vector<128x32xf32>, vector<16x32xf32> -> vector<16x32xf32>
    %c0_9 = arith.constant 0 : index
    %c0_10 = arith.constant 0 : index
    %63 = vector.load %arg5[%c0_9, %c0_10] : memref<1x32xf32, #tpu.memory_space<vmem>>, vector<1x32xf32>
    %64 = vector.broadcast %63 : vector<1x32xf32> to vector<16x32xf32>
    %65 = arith.addf %62, %64 : vector<16x32xf32>
    %66 = arith.index_cast %1 : i32 to index
    %c0_11 = arith.constant 0 : index
    %67 = vector.load %arg6[%66, %c0_11] : memref<16x32xf32, #tpu.memory_space<vmem>>, vector<16x32xf32>
    tpu.vector_store %arg6[%66, %c0_11], %65 {strides = array<i32>} : memref<16x32xf32, #tpu.memory_space<vmem>>, vector<16x32xf32>,
    %c1_i32 = arith.constant 1 : i32
    return
  }
  func.func @transform_0(%arg0: i32) -> (i32, i32) {
    %c0_i32 = arith.constant 0 : i32
    %c0_i32_0 = arith.constant 0 : i32
    return %arg0, %c0_i32 : i32, i32
  }
  func.func @transform_1(%arg0: i32) -> (i32, i32) {
    %c0_i32 = arith.constant 0 : i32
    %c0_i32_0 = arith.constant 0 : i32
    %c0_i32_1 = arith.constant 0 : i32
    return %c0_i32, %c0_i32_0 : i32, i32
  }
  func.func @transform_2(%arg0: i32) -> (i32, i32) {
    %c0_i32 = arith.constant 0 : i32
    %c0_i32_0 = arith.constant 0 : i32
    %c0_i32_1 = arith.constant 0 : i32
    return %c0_i32, %c0_i32_0 : i32, i32
  }
  func.func @transform_3(%arg0: i32) -> (i32, i32) {
    %c0_i32 = arith.constant 0 : i32
    %c0_i32_0 = arith.constant 0 : i32
    %c0_i32_1 = arith.constant 0 : i32
    return %c0_i32, %c0_i32_0 : i32, i32
  }
  func.func @transform_4(%arg0: i32) -> (i32, i32) {
    %c0_i32 = arith.constant 0 : i32
    %c0_i32_0 = arith.constant 0 : i32
    %c0_i32_1 = arith.constant 0 : i32
    return %c0_i32, %c0_i32_0 : i32, i32
  }
  func.func @transform_5(%arg0: i32) -> (i32, i32) {
    %c0_i32 = arith.constant 0 : i32
    %c0_i32_0 = arith.constant 0 : i32
    return %arg0, %c0_i32 : i32, i32
  }
}

</mosaic_0001>

<llo_original>
// kernel: tpu_custom_call.1
$region0: #{tpu_custom_call.1}
  #allocation0 [shape = 'u32[]', space=smem, size = 0x4, offset = 0x4, fixed_abs, tag = 'smem constant byte address 0x4 - core index']
  #allocation1 [shape = 'u32[72,128]{1,0:T(1,128)}', space=vmem, size = 0x9000, scoped, tag = 'internal scratch']
  %s0 = inlined_call_operand.vmem [shape: s32[16,8], index: 0, kind: input, shape index: {}]
  %s1 = inlined_call_operand.vmem [shape: f32[128,128], index: 1, kind: input, shape index: {}]
  %s2 = inlined_call_operand.vmem [shape: f32[1,128], index: 2, kind: input, shape index: {}]
  %s3 = inlined_call_operand.vmem [shape: f32[128,32], index: 3, kind: input, shape index: {}]
  %s4 = inlined_call_operand.vmem [shape: f32[1,32], index: 4, kind: input, shape index: {}]
  %s5 = inlined_call_operand.hbm [shape: f32[16,32], index: 5, kind: output, shape index: {}]
  %s6 = sld [smem:[#allocation0]]
  $region30: #{tpu_custom_call.1} parent=0
    _
  %s8 = ssub.s32 1, %s6
  %s9 = scalar_select 0, %s8, %s6
  $region1: #{tpu_custom_call.1} parent=0
    #allocation2 [shape = 'u8[8192]{0}', space=vmem, size = 0x2000, scoped, tag = 'output window, operand 0, single buffered']
    #allocation3 [shape = 's32[1]{0}', space=sflag, size = 0x4, scoped, tag = 'scoped memory for tpu_custom_call.1']
    %10 = vsyncpa [#allocation3], 0
    // Predicated region
    $region2: #{tpu_custom_call.1} parent=1 // pred_check
      _
    $region3: #{tpu_custom_call.1} parent=1 // pred_check_branch
      %12 = sbr.rel (0) target = $region5
    $region4: #{tpu_custom_call.1} parent=1 // pred_region
      _
    $region5: #{tpu_custom_call.1} parent=1 // pred_fallthru
      _
    // Predicated region
    $region6: #{tpu_custom_call.1} parent=1 // pred_check
      _
    $region7: #{tpu_custom_call.1} parent=1 // pred_check_branch
      %14 = sbr.rel (0) target = $region9
    $region8: #{tpu_custom_call.1} parent=1 // pred_region
      _
    $region9: #{tpu_custom_call.1} parent=1 // pred_fallthru
      _
    // Predicated region
    $region10: #{tpu_custom_call.1} parent=1 // pred_check
      _
    $region11: #{tpu_custom_call.1} parent=1 // pred_check_branch
      %16 = sbr.rel (0) target = $region13
    $region12: #{tpu_custom_call.1} parent=1 // pred_region
      _
    $region13: #{tpu_custom_call.1} parent=1 // pred_fallthru
      _
    // Predicated region
    $region14: #{tpu_custom_call.1} parent=1 // pred_check
      _
    $region15: #{tpu_custom_call.1} parent=1 // pred_check_branch
      %18 = sbr.rel (0) target = $region17
    $region16: #{tpu_custom_call.1} parent=1 // pred_region
      _
    $region17: #{tpu_custom_call.1} parent=1 // pred_fallthru
      _
    // Predicated region
    $region18: #{tpu_custom_call.1} parent=1 // pred_check
      _
    $region19: #{tpu_custom_call.1} parent=1 // pred_check_branch
      %20 = sbr.rel (0) target = $region21
    $region20: #{tpu_custom_call.1} parent=1 // pred_region
      _
    $region21: #{tpu_custom_call.1} parent=1 // pred_fallthru
      _
    %v21 = vld [vmem:[%s0] sm:$0xff]
    %v22 = vld [vmem:[%s0 + $0x8] sm:$0xff]
    %v23 = vlaneseq
    %v24 = vand.u32 %v23, 127
    %25 = vset.pattern.permute.xlu0 0
    %26 = vperm.xlu0 %25, %v21
    %v27 = vpop.permute.xlu0 %26
    %28 = vset.pattern.permute.xlu0 0
    %29 = vperm.xlu0 %28, %v22
    %v30 = vpop.permute.xlu0 %29
    %vm31 = vcmp.eq.s32.totalorder %v27, %v24
    %vm32 = vcmp.eq.s32.totalorder %v30, %v24
    %v33 = vsel %vm31, 1, 0
    %v34 = vsel %vm32, 1, 0
    %v35 = vcvt.s32.f32 %v33
    %v36 = vcvt.s32.f32 %v34
    %v37 = vadd.f32 %v35, 0.0
    %v38 = vadd.f32 %v36, 0.0
    %39 = vset.pattern.permute.xlu0 1
    %40 = vperm.xlu0 %39, %v21
    %v41 = vpop.permute.xlu0 %40
    %42 = vset.pattern.permute.xlu0 1
    %43 = vperm.xlu0 %42, %v22
    %v44 = vpop.permute.xlu0 %43
    %vm45 = vcmp.eq.s32.totalorder %v41, %v24
    %vm46 = vcmp.eq.s32.totalorder %v44, %v24
    %v47 = vsel %vm45, 1, 0
    %v48 = vsel %vm46, 1, 0
    %v49 = vcvt.s32.f32 %v47
    %v50 = vcvt.s32.f32 %v48
    %v51 = vadd.f32 %v37, %v49
    %v52 = vadd.f32 %v38, %v50
    %53 = vset.pattern.permute.xlu0 2
    %54 = vperm.xlu0 %53, %v21
    %v55 = vpop.permute.xlu0 %54
    %56 = vset.pattern.permute.xlu0 2
    %57 = vperm.xlu0 %56, %v22
    %v58 = vpop.permute.xlu0 %57
    %vm59 = vcmp.eq.s32.totalorder %v55, %v24
    %vm60 = vcmp.eq.s32.totalorder %v58, %v24
    %v61 = vsel %vm59, 1, 0
    %v62 = vsel %vm60, 1, 0
    %v63 = vcvt.s32.f32 %v61
    %v64 = vcvt.s32.f32 %v62
    %v65 = vadd.f32 %v51, %v63
    %v66 = vadd.f32 %v52, %v64
    %67 = vset.pattern.permute.xlu0 3
    %68 = vperm.xlu0 %67, %v21
    %v69 = vpop.permute.xlu0 %68
    %70 = vset.pattern.permute.xlu0 3
    %71 = vperm.xlu0 %70, %v22
    %v72 = vpop.permute.xlu0 %71
    %vm73 = vcmp.eq.s32.totalorder %v69, %v24
    %vm74 = vcmp.eq.s32.totalorder %v72, %v24
    %v75 = vsel %vm73, 1, 0
    %v76 = vsel %vm74, 1, 0
    %v77 = vcvt.s32.f32 %v75
    %v78 = vcvt.s32.f32 %v76
    %v79 = vadd.f32 %v65, %v77
    %v80 = vadd.f32 %v66, %v78
    %81 = vset.pattern.permute.xlu0 4
    %82 = vperm.xlu0 %81, %v21
    %v83 = vpop.permute.xlu0 %82
    %84 = vset.pattern.permute.xlu0 4
    %85 = vperm.xlu0 %84, %v22
    %v86 = vpop.permute.xlu0 %85
    %vm87 = vcmp.eq.s32.totalorder %v83, %v24
    %vm88 = vcmp.eq.s32.totalorder %v86, %v24
    %v89 = vsel %vm87, 1, 0
    %v90 = vsel %vm88, 1, 0
    %v91 = vcvt.s32.f32 %v89
    %v92 = vcvt.s32.f32 %v90
    %v93 = vadd.f32 %v79, %v91
    %v94 = vadd.f32 %v80, %v92
    %95 = vset.pattern.permute.xlu0 5
    %96 = vperm.xlu0 %95, %v21
    %v97 = vpop.permute.xlu0 %96
    %98 = vset.pattern.permute.xlu0 5
    %99 = vperm.xlu0 %98, %v22
    %v100 = vpop.permute.xlu0 %99
    %vm101 = vcmp.eq.s32.totalorder %v97, %v24
    %vm102 = vcmp.eq.s32.totalorder %v100, %v24
    %v103 = vsel %vm101, 1, 0
    %v104 = vsel %vm102, 1, 0
    %v105 = vcvt.s32.f32 %v103
    %v106 = vcvt.s32.f32 %v104
    %v107 = vadd.f32 %v93, %v105
    %v108 = vadd.f32 %v94, %v106
    %109 = vset.pattern.permute.xlu0 6
    %110 = vperm.xlu0 %109, %v21
    %v111 = vpop.permute.xlu0 %110
    %112 = vset.pattern.permute.xlu0 6
    %113 = vperm.xlu0 %112, %v22
    %v114 = vpop.permute.xlu0 %113
    %vm115 = vcmp.eq.s32.totalorder %v111, %v24
    %vm116 = vcmp.eq.s32.totalorder %v114, %v24
    %v117 = vsel %vm115, 1, 0
    %v118 = vsel %vm116, 1, 0
    %v119 = vcvt.s32.f32 %v117
    %v120 = vcvt.s32.f32 %v118
    %v121 = vadd.f32 %v107, %v119
    %v122 = vadd.f32 %v108, %v120
    %123 = vset.pattern.permute.xlu0 7
    %124 = vperm.xlu0 %123, %v21
    %v125 = vpop.permute.xlu0 %124
    %126 = vset.pattern.permute.xlu0 7
    %127 = vperm.xlu0 %126, %v22
    %v128 = vpop.permute.xlu0 %127
    %vm129 = vcmp.eq.s32.totalorder %v125, %v24
    %vm130 = vcmp.eq.s32.totalorder %v128, %v24
    %v131 = vsel %vm129, 1, 0
    %v132 = vsel %vm130, 1, 0
    %v133 = vcvt.s32.f32 %v131
    %v134 = vcvt.s32.f32 %v132
    %v135 = vadd.f32 %v121, %v133
    %v136 = vadd.f32 %v122, %v134
    %v137 = vld [vmem:[%s1] sm:$0xff]
    %v138 = vld [vmem:[%s1 + $0x8] sm:$0xff]
    %v139 = vld [vmem:[%s1 + $0x10] sm:$0xff]
    %v140 = vld [vmem:[%s1 + $0x18] sm:$0xff]
    %v141 = vld [vmem:[%s1 + $0x20] sm:$0xff]
    %v142 = vld [vmem:[%s1 + $0x28] sm:$0xff]
    %v143 = vld [vmem:[%s1 + $0x30] sm:$0xff]
    %v144 = vld [vmem:[%s1 + $0x38] sm:$0xff]
    %v145 = vld [vmem:[%s1 + $0x40] sm:$0xff]
    %v146 = vld [vmem:[%s1 + $0x48] sm:$0xff]
    %v147 = vld [vmem:[%s1 + $0x50] sm:$0xff]
    %v148 = vld [vmem:[%s1 + $0x58] sm:$0xff]
    %v149 = vld [vmem:[%s1 + $0x60] sm:$0xff]
    %v150 = vld [vmem:[%s1 + $0x68] sm:$0xff]
    %v151 = vld [vmem:[%s1 + $0x70] sm:$0xff]
    %v152 = vld [vmem:[%s1 + $0x78] sm:$0xff]
    %v153 = vld [vmem:[%s2] sm:$0x1]
    %v155 = vperm.slane %v153, 0
    %157 = vmatpush.msra.mxu0 %v152
    %158 = vmatpush.msra.mxu0 %v151
    %159 = vmatpush.msra.mxu0 %v150
    %160 = vmatpush.msra.mxu0 %v149
    %161 = vmatpush.msra.mxu0 %v148
    %162 = vmatpush.msra.mxu0 %v147
    %163 = vmatpush.msra.mxu0 %v146
    %164 = vmatpush.msra.mxu0 %v145
    %165 = vmatpush.msra.mxu0 %v144
    %166 = vmatpush.msra.mxu0 %v143
    %167 = vmatpush.msra.mxu0 %v142
    %168 = vmatpush.msra.mxu0 %v141
    %169 = vmatpush.msra.mxu0 %v140
    %170 = vmatpush.msra.mxu0 %v139
    %171 = vmatpush.msra.mxu0 %v138
    %172 = vmatpush.msra.mxu0 %v137
    %173 = vmatmul.f32.gmra.mxu0 %v135
    %v174 = vpop.f32.mrf.mxu0
    %v175 = vadd.f32 %v155, %v174
    %176 = vmatmul.f32.gmra.mxu0 %v136
    %v177 = vpop.f32.mrf.mxu0
    %v178 = vadd.f32 %v155, %v177
    %179 = vdwg.mxu0
    %v180 = vmax.f32 %v175, 0.0
    %v181 = vmax.f32 %v178, 0.0
    %v182 = vld [vmem:[%s3] sm:$0xff]
    %v183 = vld [vmem:[%s3 + $0x8] sm:$0xff]
    %v184 = vld [vmem:[%s3 + $0x10] sm:$0xff]
    %v185 = vld [vmem:[%s3 + $0x18] sm:$0xff]
    %v186 = vld [vmem:[%s3 + $0x20] sm:$0xff]
    %v187 = vld [vmem:[%s3 + $0x28] sm:$0xff]
    %v188 = vld [vmem:[%s3 + $0x30] sm:$0xff]
    %v189 = vld [vmem:[%s3 + $0x38] sm:$0xff]
    %v190 = vld [vmem:[%s3 + $0x40] sm:$0xff]
    %v191 = vld [vmem:[%s3 + $0x48] sm:$0xff]
    %v192 = vld [vmem:[%s3 + $0x50] sm:$0xff]
    %v193 = vld [vmem:[%s3 + $0x58] sm:$0xff]
    %v194 = vld [vmem:[%s3 + $0x60] sm:$0xff]
    %v195 = vld [vmem:[%s3 + $0x68] sm:$0xff]
    %v196 = vld [vmem:[%s3 + $0x70] sm:$0xff]
    %v197 = vld [vmem:[%s3 + $0x78] sm:$0xff]
    %v198 = vld [vmem:[%s4] sm:$0x1]
    %v200 = vperm.slane %v198, 0
    %202 = vmatpush.msra.mxu0 %v197
    %203 = vmatpush.msra.mxu0 %v196
    %204 = vmatpush.msra.mxu0 %v195
    %205 = vmatpush.msra.mxu0 %v194
    %206 = vmatpush.msra.mxu0 %v193
    %207 = vmatpush.msra.mxu0 %v192
    %208 = vmatpush.msra.mxu0 %v191
    %209 = vmatpush.msra.mxu0 %v190
    %210 = vmatpush.msra.mxu0 %v189
    %211 = vmatpush.msra.mxu0 %v188
    %212 = vmatpush.msra.mxu0 %v187
    %213 = vmatpush.msra.mxu0 %v186
    %214 = vmatpush.msra.mxu0 %v185
    %215 = vmatpush.msra.mxu0 %v184
    %216 = vmatpush.msra.mxu0 %v183
    %217 = vmatpush.msra.mxu0 %v182
    %218 = vmatmul.f32.gmra.mxu0 %v180
    %v219 = vpop.f32.mrf.mxu0
    %v220 = vadd.f32 %v200, %v219
    %221 = vmatmul.f32.gmra.mxu0 %v181
    %v222 = vpop.f32.mrf.mxu0
    %v223 = vadd.f32 %v200, %v222
    %224 = vdwg.mxu0
    %vm225 = vcmask 261120
    %226 = vst.msk [vmem:[#allocation2] sm:$0xff] %vm225, %v220
    %227 = vst.msk [vmem:[#allocation2 + $0x8] sm:$0xff] %vm225, %v223
    // Predicated region
    $region22: #{tpu_custom_call.1} parent=1 // pred_check
      _
    $region23: #{tpu_custom_call.1} parent=1 // pred_check_branch
      %229 = sbr.rel (0) target = $region25
    $region24: #{tpu_custom_call.1} parent=1 // pred_region
      %231 = vsyncadd [#allocation3], 0
      %s232 = sshll.u32 [#allocation2], 4
      %s233 = int_to_ptr.vmem [resolvable:$true] %s232
      %s234 = sshll.u32 %s5, 4
      %s235 = int_to_ptr.hbm [resolvable:$true] %s234
      %240 = dma.vmem_to_hbm [thread:$0]  %s233, 256, %s235, [#allocation3], 128, 128, 8
    $region25: #{tpu_custom_call.1} parent=1 // pred_fallthru
      _
    // Predicated region
    $region26: #{tpu_custom_call.1} parent=1 // pred_check
      _
    $region27: #{tpu_custom_call.1} parent=1 // pred_check_branch
      %242 = sbr.rel (0) target = $region29
    $region28: #{tpu_custom_call.1} parent=1 // pred_region
      %244 = dma.done [#allocation3], 256
    $region29: #{tpu_custom_call.1} parent=1 // pred_fallthru
      _
    %245 = vsyncpa [#allocation3], 1

</llo_original>
